<compile_context>
chip_gen: v7x
topology: tpu7x:2x2x1
jax: 0.10.0
libtpu: 0.0.40
codegen_flags: <defaults>
</compile_context>

<pallas_src>
import numpy as np

import jax
import jax.numpy as jnp
from jax.experimental import pallas as pl
from jax.experimental.pallas import tpu as pltpu


# ---------------------------------------------------------------------------
# Static model / problem dimensions
# ---------------------------------------------------------------------------
N = 2                       # batch
C_IN = 4                    # input channels
H = W = 16                  # spatial
HW = H * W                  # 256 pixel positions = 2 x 128 lanes (lane aligned)
C1 = 8                      # conv1 out channels
C2 = 16                     # conv2 out channels
NUM_CLASSES = 10
FC_PAD = 16                 # FC output rows padded to a sublane-friendly 16

# tap order t = kh*3 + kw ; lane offset of tap (dh, dw) in the flat h*W + w layout
OFFSETS = tuple((kh - 1) * W + (kw - 1) for kh in range(3) for kw in range(3))


# ---------------------------------------------------------------------------
# Fused kernel: conv1+ReLU -> conv2+ReLU -> FC -> GAP   (one image / grid step)
# ---------------------------------------------------------------------------
def _fused_forward_kernel(x_ref, w1_ref, b1_ref, w2_ref, b2_ref,
                          fw_ref, fb_ref, mask_ref, o_ref, stk_ref):
    # Working layout: channels on sublanes, the HW pixel positions on lanes.
    x = x_ref[0]                                            # (C_IN, HW)

    # ---- conv1: stack the 9 masked tap-shifts, then a single MXU matmul ----
    # roll(x, -off)[r] = x[r + off]; positions whose neighbour falls outside
    # the image (incl. row wrap-around) are zeroed by the per-tap mask, which
    # reproduces 3x3 SAME zero padding without materialising a padded image.
    for t, off in enumerate(OFFSETS):
        m = mask_ref[pl.ds(t, 1), :]                        # (1, HW) validity
        shifted = x if off == 0 else pltpu.roll(x, (-off) % HW, axis=1)
        stk_ref[pl.ds(t * C_IN, C_IN), :] = shifted * m
    h1 = jnp.dot(w1_ref[...], stk_ref[pl.ds(0, 9 * C_IN), :],
                 preferred_element_type=jnp.float32)        # (C1, HW)
    h1 = jnp.maximum(h1 + b1_ref[...], 0.0)

    # ---- conv2: same trick on h1 (scratch reused, all rows rewritten) ------
    for t, off in enumerate(OFFSETS):
        m = mask_ref[pl.ds(t, 1), :]
        shifted = h1 if off == 0 else pltpu.roll(h1, (-off) % HW, axis=1)
        stk_ref[pl.ds(t * C1, C1), :] = shifted * m
    h2 = jnp.dot(w2_ref[...], stk_ref[...],
                 preferred_element_type=jnp.float32)        # (C2, HW)
    h2 = jnp.maximum(h2 + b2_ref[...], 0.0)

    # ---- FC then global-average-pool (FC is linear, so order is exact) -----
    z = jnp.dot(fw_ref[...], h2, preferred_element_type=jnp.float32)  # (FC_PAD, HW)
    o_ref[0] = jnp.sum(z, axis=1, keepdims=True) * (1.0 / HW) + fb_ref[...]


# ---------------------------------------------------------------------------
# Parameter init + one-time preparation (hoisted out of the forward path)
# ---------------------------------------------------------------------------
def init_params(key):
    k1, k2, k3 = jax.random.split(key, 3)
    return {
        "w1": 0.1 * jax.random.normal(k1, (C1, C_IN, 3, 3), jnp.float32),   # OIHW
        "b1": jnp.linspace(-0.1, 0.1, C1, dtype=jnp.float32),
        "w2": 0.1 * jax.random.normal(k2, (C2, C1, 3, 3), jnp.float32),     # OIHW
        "b2": jnp.linspace(-0.1, 0.1, C2, dtype=jnp.float32),
        "fw": 0.1 * jax.random.normal(k3, (NUM_CLASSES, C2), jnp.float32),  # [out, in]
        "fb": jnp.linspace(-0.05, 0.05, NUM_CLASSES, dtype=jnp.float32),
    }


def _tap_masks():
    """(9, HW) validity mask per 3x3 tap — 1 where the shifted neighbour is in-image."""
    r = np.arange(HW)
    hh, ww = r // W, r % W
    masks = np.zeros((9, HW), np.float32)
    for kh in range(3):
        for kw in range(3):
            dh, dw = kh - 1, kw - 1
            valid = ((hh + dh >= 0) & (hh + dh < H) &
                     (ww + dw >= 0) & (ww + dw < W))
            masks[kh * 3 + kw] = valid.astype(np.float32)
    return jnp.asarray(masks)


def prepare_params(params):
    """OIHW conv weights -> (Cout, 9*Cin) tap-stacked matrices (tap-major,
    channel-minor, matching the in-kernel stack), FC padded to 16 rows, plus
    the constant tap masks. Done once, not per forward."""
    w1m = jnp.transpose(params["w1"], (0, 2, 3, 1)).reshape(C1, 9 * C_IN)   # (8, 36)
    w2m = jnp.transpose(params["w2"], (0, 2, 3, 1)).reshape(C2, 9 * C1)     # (16, 72)
    fw = jnp.zeros((FC_PAD, C2), jnp.float32).at[:NUM_CLASSES].set(params["fw"])
    fb = jnp.zeros((FC_PAD, 1), jnp.float32).at[:NUM_CLASSES, 0].set(params["fb"])
    return {
        "w1": w1m, "b1": params["b1"].reshape(C1, 1),
        "w2": w2m, "b2": params["b2"].reshape(C2, 1),
        "fw": fw, "fb": fb,
        "mask": _tap_masks(),                               # (9, 256)
    }


# ---------------------------------------------------------------------------
# DeepClassifier forward (single pallas_call, grid over batch)
# ---------------------------------------------------------------------------
@jax.jit
def deep_classifier_forward(prep, x_nchw):
    """x: [N, C, H, W] float32 -> logits [N, NUM_CLASSES]."""
    x = x_nchw.reshape(N, C_IN, HW).astype(jnp.float32)     # free (contiguous) reshape

    operands = (x, prep["w1"], prep["b1"], prep["w2"], prep["b2"],
                prep["fw"], prep["fb"], prep["mask"])
    shared = lambda n: (0, 0)                               # weights: same block each step
    in_specs = ([pl.BlockSpec((1, C_IN, HW), lambda n: (n, 0, 0))] +
                [pl.BlockSpec(op.shape, shared) for op in operands[1:]])

    out = pl.pallas_call(
        _fused_forward_kernel,
        out_shape=jax.ShapeDtypeStruct((N, FC_PAD, 1), jnp.float32),
        grid=(N,),
        in_specs=in_specs,
        out_specs=pl.BlockSpec((1, FC_PAD, 1), lambda n: (n, 0, 0)),
        scratch_shapes=[pltpu.VMEM((9 * C1, HW), jnp.float32)],   # tap-stack, reused
        compiler_params=pltpu.CompilerParams(
            dimension_semantics=("parallel",)),              # 2 TCs on v7x
    )(*operands)

    return out[:, :NUM_CLASSES, 0]                           # (N, 10)


# ---------------------------------------------------------------------------
# Pure-JAX reference for validation
# ---------------------------------------------------------------------------
def reference_forward(params, x_nchw):
    dn = ("NCHW", "OIHW", "NCHW")
    h1 = jax.lax.conv_general_dilated(x_nchw, params["w1"], (1, 1), "SAME",
                                      dimension_numbers=dn)
    h1 = jax.nn.relu(h1 + params["b1"][None, :, None, None])
    h2 = jax.lax.conv_general_dilated(h1, params["w2"], (1, 1), "SAME",
                                      dimension_numbers=dn)
    h2 = jax.nn.relu(h2 + params["b2"][None, :, None, None])
    pooled = jnp.mean(h2, axis=(2, 3))                       # (N, C2)
    return pooled @ params["fw"].T + params["fb"]


if __name__ == "__main__":
    key = jax.random.PRNGKey(0)
    kx, kp = jax.random.split(key)
    x = jax.random.normal(kx, (N, C_IN, H, W), jnp.float32)  # NCHW input
    params = init_params(kp)
    prep = prepare_params(params)                            # hoisted once

    logits = deep_classifier_forward(prep, x)
    logits = jax.block_until_ready(logits)

    ref = reference_forward(params, x)
    assert logits.shape == (N, NUM_CLASSES)
    max_diff = float(jnp.max(jnp.abs(logits - ref)))
    assert max_diff < 1e-4, f"max diff {max_diff}"

    print("KERNEL_OK")
</pallas_src>

<mosaic_0001>
module attributes {stable_mosaic.version = 11 : i64} {
  func.func @_fused_forward_kernel(%arg0: i32, %arg1: memref<1x4x256xf32, #tpu.memory_space<vmem>>, %arg2: memref<8x36xf32, #tpu.memory_space<vmem>>, %arg3: memref<8x1xf32, #tpu.memory_space<vmem>>, %arg4: memref<16x72xf32, #tpu.memory_space<vmem>>, %arg5: memref<16x1xf32, #tpu.memory_space<vmem>>, %arg6: memref<16x16xf32, #tpu.memory_space<vmem>>, %arg7: memref<16x1xf32, #tpu.memory_space<vmem>>, %arg8: memref<9x256xf32, #tpu.memory_space<vmem>>, %arg9: memref<1x16x1xf32, #tpu.memory_space<vmem>>, %arg10: memref<72x256xf32, #tpu.memory_space<vmem>>) attributes {dimension_semantics = [#tpu.dimension_semantics<parallel>], iteration_bounds = array<i64: 2>, scalar_prefetch = 0 : i64, scratch_operands = 1 : i64, tpu.core_type = #tpu.core_type<tc>, window_params = [{transform_indices = @transform_0, window_bounds = array<i64: 1, 4, 256>}, {pipeline_mode = #tpu.pipeline_mode<synchronous>, transform_indices = @transform_1, window_bounds = array<i64: 8, 36>}, {pipeline_mode = #tpu.pipeline_mode<synchronous>, transform_indices = @transform_2, window_bounds = array<i64: 8, 1>}, {pipeline_mode = #tpu.pipeline_mode<synchronous>, transform_indices = @transform_3, window_bounds = array<i64: 16, 72>}, {pipeline_mode = #tpu.pipeline_mode<synchronous>, transform_indices = @transform_4, window_bounds = array<i64: 16, 1>}, {pipeline_mode = #tpu.pipeline_mode<synchronous>, transform_indices = @transform_5, window_bounds = array<i64: 16, 16>}, {pipeline_mode = #tpu.pipeline_mode<synchronous>, transform_indices = @transform_6, window_bounds = array<i64: 16, 1>}, {pipeline_mode = #tpu.pipeline_mode<synchronous>, transform_indices = @transform_7, window_bounds = array<i64: 9, 256>}, {transform_indices = @transform_8, window_bounds = array<i64: 1, 16, 1>}]} {
    %c0 = arith.constant 0 : index
    %c0_0 = arith.constant 0 : index
    %c0_1 = arith.constant 0 : index
    %0 = vector.load %arg1[%c0, %c0_0, %c0_1] : memref<1x4x256xf32, #tpu.memory_space<vmem>>, vector<1x4x256xf32>
    %1 = vector.shape_cast %0 : vector<1x4x256xf32> to vector<4x256xf32>
    %c0_2 = arith.constant 0 : index
    %c0_3 = arith.constant 0 : index
    %2 = vector.load %arg8[%c0_2, %c0_3] : memref<9x256xf32, #tpu.memory_space<vmem>>, vector<1x256xf32>
    %c17_i32 = arith.constant 17 : i32
    %3 = tpu.dynamic_rotate %1 by %c17_i32 dim 1 : vector<4x256xf32>, i32 -> vector<4x256xf32>
    %4 = vector.broadcast %2 : vector<1x256xf32> to vector<4x256xf32>
    %5 = arith.mulf %3, %4 : vector<4x256xf32>
    %c0_4 = arith.constant 0 : index
    %c0_5 = arith.constant 0 : index
    %6 = vector.load %arg10[%c0_4, %c0_5] : memref<72x256xf32, #tpu.memory_space<vmem>>, vector<4x256xf32>
    tpu.vector_store %arg10[%c0_4, %c0_5], %5 {strides = array<i32>} : memref<72x256xf32, #tpu.memory_space<vmem>>, vector<4x256xf32>,
    %c1 = arith.constant 1 : index
    %c0_6 = arith.constant 0 : index
    %7 = vector.load %arg8[%c1, %c0_6] : memref<9x256xf32, #tpu.memory_space<vmem>>, vector<1x256xf32>
    %c16_i32 = arith.constant 16 : i32
    %8 = tpu.dynamic_rotate %1 by %c16_i32 dim 1 : vector<4x256xf32>, i32 -> vector<4x256xf32>
    %9 = vector.broadcast %7 : vector<1x256xf32> to vector<4x256xf32>
    %10 = arith.mulf %8, %9 : vector<4x256xf32>
    %c4 = arith.constant 4 : index
    %c0_7 = arith.constant 0 : index
    %11 = vector.load %arg10[%c4, %c0_7] : memref<72x256xf32, #tpu.memory_space<vmem>>, vector<4x256xf32>
    tpu.vector_store %arg10[%c4, %c0_7], %10 {strides = array<i32>} : memref<72x256xf32, #tpu.memory_space<vmem>>, vector<4x256xf32>,
    %c2 = arith.constant 2 : index
    %c0_8 = arith.constant 0 : index
    %12 = vector.load %arg8[%c2, %c0_8] : memref<9x256xf32, #tpu.memory_space<vmem>>, vector<1x256xf32>
    %c15_i32 = arith.constant 15 : i32
    %13 = tpu.dynamic_rotate %1 by %c15_i32 dim 1 : vector<4x256xf32>, i32 -> vector<4x256xf32>
    %14 = vector.broadcast %12 : vector<1x256xf32> to vector<4x256xf32>
    %15 = arith.mulf %13, %14 : vector<4x256xf32>
    %c8 = arith.constant 8 : index
    %c0_9 = arith.constant 0 : index
    %16 = vector.load %arg10[%c8, %c0_9] : memref<72x256xf32, #tpu.memory_space<vmem>>, vector<4x256xf32>
    tpu.vector_store %arg10[%c8, %c0_9], %15 {strides = array<i32>} : memref<72x256xf32, #tpu.memory_space<vmem>>, vector<4x256xf32>,
    %c3 = arith.constant 3 : index
    %c0_10 = arith.constant 0 : index
    %17 = vector.load %arg8[%c3, %c0_10] : memref<9x256xf32, #tpu.memory_space<vmem>>, vector<1x256xf32>
    %c1_i32 = arith.constant 1 : i32
    %18 = tpu.dynamic_rotate %1 by %c1_i32 dim 1 : vector<4x256xf32>, i32 -> vector<4x256xf32>
    %19 = vector.broadcast %17 : vector<1x256xf32> to vector<4x256xf32>
    %20 = arith.mulf %18, %19 : vector<4x256xf32>
    %c12 = arith.constant 12 : index
    %c0_11 = arith.constant 0 : index
    %21 = vector.load %arg10[%c12, %c0_11] : memref<72x256xf32, #tpu.memory_space<vmem>>, vector<4x256xf32>
    tpu.vector_store %arg10[%c12, %c0_11], %20 {strides = array<i32>} : memref<72x256xf32, #tpu.memory_space<vmem>>, vector<4x256xf32>,
    %c4_12 = arith.constant 4 : index
    %c0_13 = arith.constant 0 : index
    %22 = vector.load %arg8[%c4_12, %c0_13] : memref<9x256xf32, #tpu.memory_space<vmem>>, vector<1x256xf32>
    %23 = vector.broadcast %22 : vector<1x256xf32> to vector<4x256xf32>
    %24 = arith.mulf %1, %23 : vector<4x256xf32>
    %c16 = arith.constant 16 : index
    %c0_14 = arith.constant 0 : index
    %25 = vector.load %arg10[%c16, %c0_14] : memref<72x256xf32, #tpu.memory_space<vmem>>, vector<4x256xf32>
    tpu.vector_store %arg10[%c16, %c0_14], %24 {strides = array<i32>} : memref<72x256xf32, #tpu.memory_space<vmem>>, vector<4x256xf32>,
    %c5 = arith.constant 5 : index
    %c0_15 = arith.constant 0 : index
    %26 = vector.load %arg8[%c5, %c0_15] : memref<9x256xf32, #tpu.memory_space<vmem>>, vector<1x256xf32>
    %c255_i32 = arith.constant 255 : i32
    %27 = tpu.dynamic_rotate %1 by %c255_i32 dim 1 : vector<4x256xf32>, i32 -> vector<4x256xf32>
    %28 = vector.broadcast %26 : vector<1x256xf32> to vector<4x256xf32>
    %29 = arith.mulf %27, %28 : vector<4x256xf32>
    %c20 = arith.constant 20 : index
    %c0_16 = arith.constant 0 : index
    %30 = vector.load %arg10[%c20, %c0_16] : memref<72x256xf32, #tpu.memory_space<vmem>>, vector<4x256xf32>
    tpu.vector_store %arg10[%c20, %c0_16], %29 {strides = array<i32>} : memref<72x256xf32, #tpu.memory_space<vmem>>, vector<4x256xf32>,
    %c6 = arith.constant 6 : index
    %c0_17 = arith.constant 0 : index
    %31 = vector.load %arg8[%c6, %c0_17] : memref<9x256xf32, #tpu.memory_space<vmem>>, vector<1x256xf32>
    %c241_i32 = arith.constant 241 : i32
    %32 = tpu.dynamic_rotate %1 by %c241_i32 dim 1 : vector<4x256xf32>, i32 -> vector<4x256xf32>
    %33 = vector.broadcast %31 : vector<1x256xf32> to vector<4x256xf32>
    %34 = arith.mulf %32, %33 : vector<4x256xf32>
    %c24 = arith.constant 24 : index
    %c0_18 = arith.constant 0 : index
    %35 = vector.load %arg10[%c24, %c0_18] : memref<72x256xf32, #tpu.memory_space<vmem>>, vector<4x256xf32>
    tpu.vector_store %arg10[%c24, %c0_18], %34 {strides = array<i32>} : memref<72x256xf32, #tpu.memory_space<vmem>>, vector<4x256xf32>,
    %c7 = arith.constant 7 : index
    %c0_19 = arith.constant 0 : index
    %36 = vector.load %arg8[%c7, %c0_19] : memref<9x256xf32, #tpu.memory_space<vmem>>, vector<1x256xf32>
    %c240_i32 = arith.constant 240 : i32
    %37 = tpu.dynamic_rotate %1 by %c240_i32 dim 1 : vector<4x256xf32>, i32 -> vector<4x256xf32>
    %38 = vector.broadcast %36 : vector<1x256xf32> to vector<4x256xf32>
    %39 = arith.mulf %37, %38 : vector<4x256xf32>
    %c28 = arith.constant 28 : index
    %c0_20 = arith.constant 0 : index
    %40 = vector.load %arg10[%c28, %c0_20] : memref<72x256xf32, #tpu.memory_space<vmem>>, vector<4x256xf32>
    tpu.vector_store %arg10[%c28, %c0_20], %39 {strides = array<i32>} : memref<72x256xf32, #tpu.memory_space<vmem>>, vector<4x256xf32>,
    %c8_21 = arith.constant 8 : index
    %c0_22 = arith.constant 0 : index
    %41 = vector.load %arg8[%c8_21, %c0_22] : memref<9x256xf32, #tpu.memory_space<vmem>>, vector<1x256xf32>
    %c239_i32 = arith.constant 239 : i32
    %42 = tpu.dynamic_rotate %1 by %c239_i32 dim 1 : vector<4x256xf32>, i32 -> vector<4x256xf32>
    %43 = vector.broadcast %41 : vector<1x256xf32> to vector<4x256xf32>
    %44 = arith.mulf %42, %43 : vector<4x256xf32>
    %c32 = arith.constant 32 : index
    %c0_23 = arith.constant 0 : index
    %45 = vector.load %arg10[%c32, %c0_23] : memref<72x256xf32, #tpu.memory_space<vmem>>, vector<4x256xf32>
    tpu.vector_store %arg10[%c32, %c0_23], %44 {strides = array<i32>} : memref<72x256xf32, #tpu.memory_space<vmem>>, vector<4x256xf32>,
    %c0_24 = arith.constant 0 : index
    %c0_25 = arith.constant 0 : index
    %46 = vector.load %arg2[%c0_24, %c0_25] : memref<8x36xf32, #tpu.memory_space<vmem>>, vector<8x36xf32>
    %c0_26 = arith.constant 0 : index
    %c0_27 = arith.constant 0 : index
    %47 = vector.load %arg10[%c0_26, %c0_27] : memref<72x256xf32, #tpu.memory_space<vmem>>, vector<36x256xf32>
    %cst = arith.constant dense<0.000000e+00> : vector<8x256xf32>
    %48 = tpu.matmul %46, %47, %cst {dimension_numbers = #tpu.dot_dimension_numbers<[1], [0], [0], [1], [0, 0, 1, 1], [], []>} : vector<8x36xf32>, vector<36x256xf32>, vector<8x256xf32> -> vector<8x256xf32>
    %c0_28 = arith.constant 0 : index
    %c0_29 = arith.constant 0 : index
    %49 = vector.load %arg3[%c0_28, %c0_29] : memref<8x1xf32, #tpu.memory_space<vmem>>, vector<8x1xf32>
    %50 = vector.broadcast %49 : vector<8x1xf32> to vector<8x256xf32>
    %51 = arith.addf %48, %50 : vector<8x256xf32>
    %cst_30 = arith.constant 0.000000e+00 : f32
    %52 = vector.broadcast %cst_30 : f32 to vector<8x256xf32>
    %53 = arith.maximumf %51, %52 : vector<8x256xf32>
    %c0_31 = arith.constant 0 : index
    %c0_32 = arith.constant 0 : index
    %54 = vector.load %arg8[%c0_31, %c0_32] : memref<9x256xf32, #tpu.memory_space<vmem>>, vector<1x256xf32>
    %c17_i32_33 = arith.constant 17 : i32
    %55 = tpu.dynamic_rotate %53 by %c17_i32_33 dim 1 : vector<8x256xf32>, i32 -> vector<8x256xf32>
    %56 = vector.broadcast %54 : vector<1x256xf32> to vector<8x256xf32>
    %57 = arith.mulf %55, %56 : vector<8x256xf32>
    %c0_34 = arith.constant 0 : index
    %c0_35 = arith.constant 0 : index
    %58 = vector.load %arg10[%c0_34, %c0_35] : memref<72x256xf32, #tpu.memory_space<vmem>>, vector<8x256xf32>
    tpu.vector_store %arg10[%c0_34, %c0_35], %57 {strides = array<i32>} : memref<72x256xf32, #tpu.memory_space<vmem>>, vector<8x256xf32>,
    %c1_36 = arith.constant 1 : index
    %c0_37 = arith.constant 0 : index
    %59 = vector.load %arg8[%c1_36, %c0_37] : memref<9x256xf32, #tpu.memory_space<vmem>>, vector<1x256xf32>
    %c16_i32_38 = arith.constant 16 : i32
    %60 = tpu.dynamic_rotate %53 by %c16_i32_38 dim 1 : vector<8x256xf32>, i32 -> vector<8x256xf32>
    %61 = vector.broadcast %59 : vector<1x256xf32> to vector<8x256xf32>
    %62 = arith.mulf %60, %61 : vector<8x256xf32>
    %c8_39 = arith.constant 8 : index
    %c0_40 = arith.constant 0 : index
    %63 = vector.load %arg10[%c8_39, %c0_40] : memref<72x256xf32, #tpu.memory_space<vmem>>, vector<8x256xf32>
    tpu.vector_store %arg10[%c8_39, %c0_40], %62 {strides = array<i32>} : memref<72x256xf32, #tpu.memory_space<vmem>>, vector<8x256xf32>,
    %c2_41 = arith.constant 2 : index
    %c0_42 = arith.constant 0 : index
    %64 = vector.load %arg8[%c2_41, %c0_42] : memref<9x256xf32, #tpu.memory_space<vmem>>, vector<1x256xf32>
    %c15_i32_43 = arith.constant 15 : i32
    %65 = tpu.dynamic_rotate %53 by %c15_i32_43 dim 1 : vector<8x256xf32>, i32 -> vector<8x256xf32>
    %66 = vector.broadcast %64 : vector<1x256xf32> to vector<8x256xf32>
    %67 = arith.mulf %65, %66 : vector<8x256xf32>
    %c16_44 = arith.constant 16 : index
    %c0_45 = arith.constant 0 : index
    %68 = vector.load %arg10[%c16_44, %c0_45] : memref<72x256xf32, #tpu.memory_space<vmem>>, vector<8x256xf32>
    tpu.vector_store %arg10[%c16_44, %c0_45], %67 {strides = array<i32>} : memref<72x256xf32, #tpu.memory_space<vmem>>, vector<8x256xf32>,
    %c3_46 = arith.constant 3 : index
    %c0_47 = arith.constant 0 : index
    %69 = vector.load %arg8[%c3_46, %c0_47] : memref<9x256xf32, #tpu.memory_space<vmem>>, vector<1x256xf32>
    %c1_i32_48 = arith.constant 1 : i32
    %70 = tpu.dynamic_rotate %53 by %c1_i32_48 dim 1 : vector<8x256xf32>, i32 -> vector<8x256xf32>
    %71 = vector.broadcast %69 : vector<1x256xf32> to vector<8x256xf32>
    %72 = arith.mulf %70, %71 : vector<8x256xf32>
    %c24_49 = arith.constant 24 : index
    %c0_50 = arith.constant 0 : index
    %73 = vector.load %arg10[%c24_49, %c0_50] : memref<72x256xf32, #tpu.memory_space<vmem>>, vector<8x256xf32>
    tpu.vector_store %arg10[%c24_49, %c0_50], %72 {strides = array<i32>} : memref<72x256xf32, #tpu.memory_space<vmem>>, vector<8x256xf32>,
    %c4_51 = arith.constant 4 : index
    %c0_52 = arith.constant 0 : index
    %74 = vector.load %arg8[%c4_51, %c0_52] : memref<9x256xf32, #tpu.memory_space<vmem>>, vector<1x256xf32>
    %75 = vector.broadcast %74 : vector<1x256xf32> to vector<8x256xf32>
    %76 = arith.mulf %53, %75 : vector<8x256xf32>
    %c32_53 = arith.constant 32 : index
    %c0_54 = arith.constant 0 : index
    %77 = vector.load %arg10[%c32_53, %c0_54] : memref<72x256xf32, #tpu.memory_space<vmem>>, vector<8x256xf32>
    tpu.vector_store %arg10[%c32_53, %c0_54], %76 {strides = array<i32>} : memref<72x256xf32, #tpu.memory_space<vmem>>, vector<8x256xf32>,
    %c5_55 = arith.constant 5 : index
    %c0_56 = arith.constant 0 : index
    %78 = vector.load %arg8[%c5_55, %c0_56] : memref<9x256xf32, #tpu.memory_space<vmem>>, vector<1x256xf32>
    %c255_i32_57 = arith.constant 255 : i32
    %79 = tpu.dynamic_rotate %53 by %c255_i32_57 dim 1 : vector<8x256xf32>, i32 -> vector<8x256xf32>
    %80 = vector.broadcast %78 : vector<1x256xf32> to vector<8x256xf32>
    %81 = arith.mulf %79, %80 : vector<8x256xf32>
    %c40 = arith.constant 40 : index
    %c0_58 = arith.constant 0 : index
    %82 = vector.load %arg10[%c40, %c0_58] : memref<72x256xf32, #tpu.memory_space<vmem>>, vector<8x256xf32>
    tpu.vector_store %arg10[%c40, %c0_58], %81 {strides = array<i32>} : memref<72x256xf32, #tpu.memory_space<vmem>>, vector<8x256xf32>,
    %c6_59 = arith.constant 6 : index
    %c0_60 = arith.constant 0 : index
    %83 = vector.load %arg8[%c6_59, %c0_60] : memref<9x256xf32, #tpu.memory_space<vmem>>, vector<1x256xf32>
    %c241_i32_61 = arith.constant 241 : i32
    %84 = tpu.dynamic_rotate %53 by %c241_i32_61 dim 1 : vector<8x256xf32>, i32 -> vector<8x256xf32>
    %85 = vector.broadcast %83 : vector<1x256xf32> to vector<8x256xf32>
    %86 = arith.mulf %84, %85 : vector<8x256xf32>
    %c48 = arith.constant 48 : index
    %c0_62 = arith.constant 0 : index
    %87 = vector.load %arg10[%c48, %c0_62] : memref<72x256xf32, #tpu.memory_space<vmem>>, vector<8x256xf32>
    tpu.vector_store %arg10[%c48, %c0_62], %86 {strides = array<i32>} : memref<72x256xf32, #tpu.memory_space<vmem>>, vector<8x256xf32>,
    %c7_63 = arith.constant 7 : index
    %c0_64 = arith.constant 0 : index
    %88 = vector.load %arg8[%c7_63, %c0_64] : memref<9x256xf32, #tpu.memory_space<vmem>>, vector<1x256xf32>
    %c240_i32_65 = arith.constant 240 : i32
    %89 = tpu.dynamic_rotate %53 by %c240_i32_65 dim 1 : vector<8x256xf32>, i32 -> vector<8x256xf32>
    %90 = vector.broadcast %88 : vector<1x256xf32> to vector<8x256xf32>
    %91 = arith.mulf %89, %90 : vector<8x256xf32>
    %c56 = arith.constant 56 : index
    %c0_66 = arith.constant 0 : index
    %92 = vector.load %arg10[%c56, %c0_66] : memref<72x256xf32, #tpu.memory_space<vmem>>, vector<8x256xf32>
    tpu.vector_store %arg10[%c56, %c0_66], %91 {strides = array<i32>} : memref<72x256xf32, #tpu.memory_space<vmem>>, vector<8x256xf32>,
    %c8_67 = arith.constant 8 : index
    %c0_68 = arith.constant 0 : index
    %93 = vector.load %arg8[%c8_67, %c0_68] : memref<9x256xf32, #tpu.memory_space<vmem>>, vector<1x256xf32>
    %c239_i32_69 = arith.constant 239 : i32
    %94 = tpu.dynamic_rotate %53 by %c239_i32_69 dim 1 : vector<8x256xf32>, i32 -> vector<8x256xf32>
    %95 = vector.broadcast %93 : vector<1x256xf32> to vector<8x256xf32>
    %96 = arith.mulf %94, %95 : vector<8x256xf32>
    %c64 = arith.constant 64 : index
    %c0_70 = arith.constant 0 : index
    %97 = vector.load %arg10[%c64, %c0_70] : memref<72x256xf32, #tpu.memory_space<vmem>>, vector<8x256xf32>
    tpu.vector_store %arg10[%c64, %c0_70], %96 {strides = array<i32>} : memref<72x256xf32, #tpu.memory_space<vmem>>, vector<8x256xf32>,
    %c0_71 = arith.constant 0 : index
    %c0_72 = arith.constant 0 : index
    %98 = vector.load %arg4[%c0_71, %c0_72] : memref<16x72xf32, #tpu.memory_space<vmem>>, vector<16x72xf32>
    %c0_73 = arith.constant 0 : index
    %c0_74 = arith.constant 0 : index
    %99 = vector.load %arg10[%c0_73, %c0_74] : memref<72x256xf32, #tpu.memory_space<vmem>>, vector<72x256xf32>
    %cst_75 = arith.constant dense<0.000000e+00> : vector<16x256xf32>
    %100 = tpu.matmul %98, %99, %cst_75 {dimension_numbers = #tpu.dot_dimension_numbers<[1], [0], [0], [1], [0, 0, 1, 1], [], []>} : vector<16x72xf32>, vector<72x256xf32>, vector<16x256xf32> -> vector<16x256xf32>
    %c0_76 = arith.constant 0 : index
    %c0_77 = arith.constant 0 : index
    %101 = vector.load %arg5[%c0_76, %c0_77] : memref<16x1xf32, #tpu.memory_space<vmem>>, vector<16x1xf32>
    %102 = vector.broadcast %101 : vector<16x1xf32> to vector<16x256xf32>
    %103 = arith.addf %100, %102 : vector<16x256xf32>
    %cst_78 = arith.constant 0.000000e+00 : f32
    %104 = vector.broadcast %cst_78 : f32 to vector<16x256xf32>
    %105 = arith.maximumf %103, %104 : vector<16x256xf32>
    %c0_79 = arith.constant 0 : index
    %c0_80 = arith.constant 0 : index
    %106 = vector.load %arg6[%c0_79, %c0_80] : memref<16x16xf32, #tpu.memory_space<vmem>>, vector<16x16xf32>
    %cst_81 = arith.constant dense<0.000000e+00> : vector<16x256xf32>
    %107 = tpu.matmul %106, %105, %cst_81 {dimension_numbers = #tpu.dot_dimension_numbers<[1], [0], [0], [1], [0, 0, 1, 1], [], []>} : vector<16x16xf32>, vector<16x256xf32>, vector<16x256xf32> -> vector<16x256xf32>
    %cst_82 = arith.constant dense<0.000000e+00> : vector<16xf32>
    %108 = vector.multi_reduction <add>, %107, %cst_82 [1] : vector<16x256xf32> to vector<16xf32>
    %109 = vector.shape_cast %108 : vector<16xf32> to vector<16x1xf32>
    %cst_83 = arith.constant 3.906250e-03 : f32
    %110 = vector.broadcast %cst_83 : f32 to vector<16x1xf32>
    %111 = arith.mulf %109, %110 : vector<16x1xf32>
    %c0_84 = arith.constant 0 : index
    %c0_85 = arith.constant 0 : index
    %112 = vector.load %arg7[%c0_84, %c0_85] : memref<16x1xf32, #tpu.memory_space<vmem>>, vector<16x1xf32>
    %113 = arith.addf %111, %112 : vector<16x1xf32>
    %c0_86 = arith.constant 0 : index
    %c0_87 = arith.constant 0 : index
    %c0_88 = arith.constant 0 : index
    %114 = vector.load %arg9[%c0_86, %c0_87, %c0_88] : memref<1x16x1xf32, #tpu.memory_space<vmem>>, vector<1x16x1xf32>
    %115 = vector.shape_cast %114 : vector<1x16x1xf32> to vector<16x1xf32>
    %116 = vector.shape_cast %113 : vector<16x1xf32> to vector<1x16x1xf32>
    tpu.vector_store %arg9[%c0_86, %c0_87, %c0_88], %116 {strides = array<i32>} : memref<1x16x1xf32, #tpu.memory_space<vmem>>, vector<1x16x1xf32>,
    return
  }
  func.func @transform_0(%arg0: i32) -> (i32, i32, i32) {
    %c0_i32 = arith.constant 0 : i32
    %c0_i32_0 = arith.constant 0 : i32
    %c0_i32_1 = arith.constant 0 : i32
    return %arg0, %c0_i32, %c0_i32_0 : i32, i32, i32
  }
  func.func @transform_1(%arg0: i32) -> (i32, i32) {
    %c0_i32 = arith.constant 0 : i32
    %c0_i32_0 = arith.constant 0 : i32
    %c0_i32_1 = arith.constant 0 : i32
    return %c0_i32, %c0_i32_0 : i32, i32
  }
  func.func @transform_2(%arg0: i32) -> (i32, i32) {
    %c0_i32 = arith.constant 0 : i32
    %c0_i32_0 = arith.constant 0 : i32
    %c0_i32_1 = arith.constant 0 : i32
    return %c0_i32, %c0_i32_0 : i32, i32
  }
  func.func @transform_3(%arg0: i32) -> (i32, i32) {
    %c0_i32 = arith.constant 0 : i32
    %c0_i32_0 = arith.constant 0 : i32
    %c0_i32_1 = arith.constant 0 : i32
    return %c0_i32, %c0_i32_0 : i32, i32
  }
  func.func @transform_4(%arg0: i32) -> (i32, i32) {
    %c0_i32 = arith.constant 0 : i32
    %c0_i32_0 = arith.constant 0 : i32
    %c0_i32_1 = arith.constant 0 : i32
    return %c0_i32, %c0_i32_0 : i32, i32
  }
  func.func @transform_5(%arg0: i32) -> (i32, i32) {
    %c0_i32 = arith.constant 0 : i32
    %c0_i32_0 = arith.constant 0 : i32
    %c0_i32_1 = arith.constant 0 : i32
    return %c0_i32, %c0_i32_0 : i32, i32
  }
  func.func @transform_6(%arg0: i32) -> (i32, i32) {
    %c0_i32 = arith.constant 0 : i32
    %c0_i32_0 = arith.constant 0 : i32
    %c0_i32_1 = arith.constant 0 : i32
    return %c0_i32, %c0_i32_0 : i32, i32
  }
  func.func @transform_7(%arg0: i32) -> (i32, i32) {
    %c0_i32 = arith.constant 0 : i32
    %c0_i32_0 = arith.constant 0 : i32
    %c0_i32_1 = arith.constant 0 : i32
    return %c0_i32, %c0_i32_0 : i32, i32
  }
  func.func @transform_8(%arg0: i32) -> (i32, i32, i32) {
    %c0_i32 = arith.constant 0 : i32
    %c0_i32_0 = arith.constant 0 : i32
    %c0_i32_1 = arith.constant 0 : i32
    return %arg0, %c0_i32, %c0_i32_0 : i32, i32, i32
  }
}

</mosaic_0001>

<llo_original>
// kernel: deep_classifier_forward.1
$region0: #{deep_classifier_forward.1}
  #allocation0 [shape = 'u32[]', space=smem, size = 0x4, offset = 0x4, fixed_abs, tag = 'smem constant byte address 0x4 - core index']
  #allocation1 [shape = 'u32[144,128]{1,0:T(1,128)}', space=vmem, size = 0x12000, scoped, tag = 'internal scratch']
  #allocation2 [shape = 'f32[72,256]{1,0:T(8,128)}', space=vmem, size = 0x12000, scoped, tag = 'scratch operand']
  %s0 = inlined_call_operand.vmem [shape: f32[2,4,256], index: 0, kind: input, shape index: {}]
  %s1 = inlined_call_operand.vmem [shape: f32[8,36], index: 1, kind: input, shape index: {}]
  %s2 = inlined_call_operand.vmem [shape: f32[8,1], index: 2, kind: input, shape index: {}]
  %s3 = inlined_call_operand.vmem [shape: f32[16,72], index: 3, kind: input, shape index: {}]
  %s4 = inlined_call_operand.vmem [shape: f32[16,1], index: 4, kind: input, shape index: {}]
  %s5 = inlined_call_operand.vmem [shape: f32[16,16], index: 5, kind: input, shape index: {}]
  %s6 = inlined_call_operand.vmem [shape: f32[16,1], index: 6, kind: input, shape index: {}]
  %s7 = inlined_call_operand.vmem [shape: f32[9,256], index: 7, kind: input, shape index: {}]
  %s8 = inlined_call_operand.vmem [shape: f32[2,16,1], index: 8, kind: output, shape index: {}]
  %s9 = sld [smem:[#allocation0]]
  $region65: #{deep_classifier_forward.1} parent=0
    _
  %s11 = ssub.s32 1, %s9
  %s12 = scalar_select 0, %s11, %s9
  loop: start=0, step=1, limit=4
  $region2: #{deep_classifier_forward.1} parent=0 // loop_pre_header
    _
  $region3: #{deep_classifier_forward.1} parent=0 // loop_header
    %s14 = sphi 0, %s18
    %p15 = scmp.ge.s32.totalorder %s14, 4
    %s24 = sphi 0, %s26
    %s27 = sphi 0, %s24
    %s28 = sphi 0, %s27
    %s44 = sphi 0, %s28
    %s48 = sphi 0, %s48
    %s50 = sphi 0, %s48
    %s51 = sphi 0, %s50
    %s65 = sphi 0, %s51
    %s69 = sphi 0, %s69
    %s71 = sphi 0, %s69
    %s72 = sphi 0, %s71
    %s86 = sphi 0, %s72
    %s90 = sphi 0, %s90
    %s92 = sphi 0, %s90
    %s93 = sphi 0, %s92
    %s107 = sphi 0, %s93
    %s111 = sphi 0, %s111
    %s113 = sphi 0, %s111
    %s114 = sphi 0, %s113
    %s128 = sphi 0, %s114
    %s132 = sphi 0, %s132
    %s134 = sphi 0, %s132
    %s135 = sphi 0, %s134
    %s149 = sphi 0, %s135
    %s153 = sphi 0, %s153
    %s155 = sphi 0, %s153
    %s156 = sphi 0, %s155
    %s170 = sphi 0, %s156
    %s174 = sphi 0, %s174
    %s176 = sphi 0, %s174
    %s177 = sphi 0, %s176
    %s191 = sphi 0, %s177
    %s197 = sphi 0, %s199
    %s200 = sphi 0, %s197
    %s201 = sphi 0, %s200
    %s217 = sphi 0, %s201
  $region4: #{deep_classifier_forward.1} parent=0 // loop_header_branch
    %17 = sbr.rel (%p15) target = $region8
  $region5: #{deep_classifier_forward.1} parent=0 // loop_body
    %s19 = ssub.s32 %s14, 1
    %s20 = ssub.s32 %s14, 2
    %s21 = sadd.s32 %s14, 1
    %s22 = ssub.s32 %s14, %s21
    %p23 = scmp.eq.s32.totalorder %s22, 0
    %s25 = sadd.s32 %s24, 1
    %s26 = scalar_select %p23, %s24, %s25
    %p29 = pneg %p23
    %p30 = scmp.eq.s32.totalorder %s14, 1
    %p31 = por %p29, %p30
    %p32 = scmp.ne.s32.totalorder %s24, %s27
    %p33 = scmp.eq.s32.totalorder %s14, 0
    %p34 = por %p32, %p33
    %p35 = scmp.ne.s32.totalorder %s24, %s27
    %p36 = scmp.eq.s32.totalorder %s19, 1
    %p37 = por %p35, %p36
    %p38 = scmp.ne.s32.totalorder %s27, %s28
    %p39 = scmp.eq.s32.totalorder %s19, 0
    %p40 = por %p38, %p39
    %p41 = scmp.ne.s32.totalorder %s27, %s28
    %p42 = scmp.eq.s32.totalorder %s20, 1
    %p43 = por %p41, %p42
    %p45 = scmp.ne.s32.totalorder %s28, %s44
    %p46 = scmp.eq.s32.totalorder %s20, 0
    %p47 = por %p45, %p46
    %s49 = sadd.s32 %s48, 1
    %p52 = scmp.eq.s32.totalorder %s14, 1
    %p53 = scmp.ne.s32.totalorder %s48, %s50
    %p54 = scmp.eq.s32.totalorder %s14, 0
    %p55 = por %p53, %p54
    %p56 = scmp.ne.s32.totalorder %s48, %s50
    %p57 = scmp.eq.s32.totalorder %s19, 1
    %p58 = por %p56, %p57
    %p59 = scmp.ne.s32.totalorder %s50, %s51
    %p60 = scmp.eq.s32.totalorder %s19, 0
    %p61 = por %p59, %p60
    %p62 = scmp.ne.s32.totalorder %s50, %s51
    %p63 = scmp.eq.s32.totalorder %s20, 1
    %p64 = por %p62, %p63
    %p66 = scmp.ne.s32.totalorder %s51, %s65
    %p67 = scmp.eq.s32.totalorder %s20, 0
    %p68 = por %p66, %p67
    %s70 = sadd.s32 %s69, 1
    %p73 = scmp.eq.s32.totalorder %s14, 1
    %p74 = scmp.ne.s32.totalorder %s69, %s71
    %p75 = scmp.eq.s32.totalorder %s14, 0
    %p76 = por %p74, %p75
    %p77 = scmp.ne.s32.totalorder %s69, %s71
    %p78 = scmp.eq.s32.totalorder %s19, 1
    %p79 = por %p77, %p78
    %p80 = scmp.ne.s32.totalorder %s71, %s72
    %p81 = scmp.eq.s32.totalorder %s19, 0
    %p82 = por %p80, %p81
    %p83 = scmp.ne.s32.totalorder %s71, %s72
    %p84 = scmp.eq.s32.totalorder %s20, 1
    %p85 = por %p83, %p84
    %p87 = scmp.ne.s32.totalorder %s72, %s86
    %p88 = scmp.eq.s32.totalorder %s20, 0
    %p89 = por %p87, %p88
    %s91 = sadd.s32 %s90, 1
    %p94 = scmp.eq.s32.totalorder %s14, 1
    %p95 = scmp.ne.s32.totalorder %s90, %s92
    %p96 = scmp.eq.s32.totalorder %s14, 0
    %p97 = por %p95, %p96
    %p98 = scmp.ne.s32.totalorder %s90, %s92
    %p99 = scmp.eq.s32.totalorder %s19, 1
    %p100 = por %p98, %p99
    %p101 = scmp.ne.s32.totalorder %s92, %s93
    %p102 = scmp.eq.s32.totalorder %s19, 0
    %p103 = por %p101, %p102
    %p104 = scmp.ne.s32.totalorder %s92, %s93
    %p105 = scmp.eq.s32.totalorder %s20, 1
    %p106 = por %p104, %p105
    %p108 = scmp.ne.s32.totalorder %s93, %s107
    %p109 = scmp.eq.s32.totalorder %s20, 0
    %p110 = por %p108, %p109
    %s112 = sadd.s32 %s111, 1
    %p115 = scmp.eq.s32.totalorder %s14, 1
    %p116 = scmp.ne.s32.totalorder %s111, %s113
    %p117 = scmp.eq.s32.totalorder %s14, 0
    %p118 = por %p116, %p117
    %p119 = scmp.ne.s32.totalorder %s111, %s113
    %p120 = scmp.eq.s32.totalorder %s19, 1
    %p121 = por %p119, %p120
    %p122 = scmp.ne.s32.totalorder %s113, %s114
    %p123 = scmp.eq.s32.totalorder %s19, 0
    %p124 = por %p122, %p123
    %p125 = scmp.ne.s32.totalorder %s113, %s114
    %p126 = scmp.eq.s32.totalorder %s20, 1
    %p127 = por %p125, %p126
    %p129 = scmp.ne.s32.totalorder %s114, %s128
    %p130 = scmp.eq.s32.totalorder %s20, 0
    %p131 = por %p129, %p130
    %s133 = sadd.s32 %s132, 1
    %p136 = scmp.eq.s32.totalorder %s14, 1
    %p137 = scmp.ne.s32.totalorder %s132, %s134
    %p138 = scmp.eq.s32.totalorder %s14, 0
    %p139 = por %p137, %p138
    %p140 = scmp.ne.s32.totalorder %s132, %s134
    %p141 = scmp.eq.s32.totalorder %s19, 1
    %p142 = por %p140, %p141
    %p143 = scmp.ne.s32.totalorder %s134, %s135
    %p144 = scmp.eq.s32.totalorder %s19, 0
    %p145 = por %p143, %p144
    %p146 = scmp.ne.s32.totalorder %s134, %s135
    %p147 = scmp.eq.s32.totalorder %s20, 1
    %p148 = por %p146, %p147
    %p150 = scmp.ne.s32.totalorder %s135, %s149
    %p151 = scmp.eq.s32.totalorder %s20, 0
    %p152 = por %p150, %p151
    %s154 = sadd.s32 %s153, 1
    %p157 = scmp.eq.s32.totalorder %s14, 1
    %p158 = scmp.ne.s32.totalorder %s153, %s155
    %p159 = scmp.eq.s32.totalorder %s14, 0
    %p160 = por %p158, %p159
    %p161 = scmp.ne.s32.totalorder %s153, %s155
    %p162 = scmp.eq.s32.totalorder %s19, 1
    %p163 = por %p161, %p162
    %p164 = scmp.ne.s32.totalorder %s155, %s156
    %p165 = scmp.eq.s32.totalorder %s19, 0
    %p166 = por %p164, %p165
    %p167 = scmp.ne.s32.totalorder %s155, %s156
    %p168 = scmp.eq.s32.totalorder %s20, 1
    %p169 = por %p167, %p168
    %p171 = scmp.ne.s32.totalorder %s156, %s170
    %p172 = scmp.eq.s32.totalorder %s20, 0
    %p173 = por %p171, %p172
    %s175 = sadd.s32 %s174, 1
    %p178 = scmp.eq.s32.totalorder %s14, 1
    %p179 = scmp.ne.s32.totalorder %s174, %s176
    %p180 = scmp.eq.s32.totalorder %s14, 0
    %p181 = por %p179, %p180
    %p182 = scmp.ne.s32.totalorder %s174, %s176
    %p183 = scmp.eq.s32.totalorder %s19, 1
    %p184 = por %p182, %p183
    %p185 = scmp.ne.s32.totalorder %s176, %s177
    %p186 = scmp.eq.s32.totalorder %s19, 0
    %p187 = por %p185, %p186
    %p188 = scmp.ne.s32.totalorder %s176, %s177
    %p189 = scmp.eq.s32.totalorder %s20, 1
    %p190 = por %p188, %p189
    %p192 = scmp.ne.s32.totalorder %s177, %s191
    %p193 = scmp.eq.s32.totalorder %s20, 0
    %p194 = por %p192, %p193
    %s195 = ssub.s32 %s14, %s21
    %p196 = scmp.eq.s32.totalorder %s195, 0
    %s198 = sadd.s32 %s197, 1
    %s199 = scalar_select %p196, %s197, %s198
    %p202 = pneg %p196
    %p203 = scmp.eq.s32.totalorder %s14, 1
    %p204 = por %p202, %p203
    %p205 = scmp.ne.s32.totalorder %s197, %s200
    %p206 = scmp.eq.s32.totalorder %s14, 0
    %p207 = por %p205, %p206
    %p208 = scmp.ne.s32.totalorder %s197, %s200
    %p209 = scmp.eq.s32.totalorder %s19, 1
    %p210 = por %p208, %p209
    %p211 = scmp.ne.s32.totalorder %s200, %s201
    %p212 = scmp.eq.s32.totalorder %s19, 0
    %p213 = por %p211, %p212
    %p214 = scmp.ne.s32.totalorder %s200, %s201
    %p215 = scmp.eq.s32.totalorder %s20, 1
    %p216 = por %p214, %p215
    %p218 = scmp.ne.s32.totalorder %s201, %s217
    %p219 = scmp.eq.s32.totalorder %s20, 0
    %p220 = por %p218, %p219
    %p221 = scmp.le.s32.totalorder 1, %s14
    %p222 = scmp.lt.s32.totalorder %s14, 3
    %p223 = pnand %p221, %p222
    %p224 = pneg %p223
    // Predicated region
    $region9: #{deep_classifier_forward.1} parent=5 // pred_check
      _
    $region10: #{deep_classifier_forward.1} parent=5 // pred_check_branch
      %226 = sbr.rel (%p223) target = $region12
    $region11: #{deep_classifier_forward.1} parent=5 // pred_region
      %s227 = ssub.s32 %s14, 1
      // Predicated region
      $region13: #{deep_classifier_forward.1} parent=11 // pred_check
        %p228 = pneg %p61
      $region14: #{deep_classifier_forward.1} parent=11 // pred_check_branch
        %230 = sbr.rel (%p228) target = $region16
      $region15: #{deep_classifier_forward.1} parent=11 // pred_region
        _
      $region16: #{deep_classifier_forward.1} parent=11 // pred_fallthru
        _
      // Predicated region
      $region17: #{deep_classifier_forward.1} parent=11 // pred_check
        %p231 = pneg %p82
      $region18: #{deep_classifier_forward.1} parent=11 // pred_check_branch
        %233 = sbr.rel (%p231) target = $region20
      $region19: #{deep_classifier_forward.1} parent=11 // pred_region
        _
      $region20: #{deep_classifier_forward.1} parent=11 // pred_fallthru
        _
      // Predicated region
      $region21: #{deep_classifier_forward.1} parent=11 // pred_check
        %p234 = pneg %p103
      $region22: #{deep_classifier_forward.1} parent=11 // pred_check_branch
        %236 = sbr.rel (%p234) target = $region24
      $region23: #{deep_classifier_forward.1} parent=11 // pred_region
        _
      $region24: #{deep_classifier_forward.1} parent=11 // pred_fallthru
        _
      // Predicated region
      $region25: #{deep_classifier_forward.1} parent=11 // pred_check
        %p237 = pneg %p124
      $region26: #{deep_classifier_forward.1} parent=11 // pred_check_branch
        %239 = sbr.rel (%p237) target = $region28
      $region27: #{deep_classifier_forward.1} parent=11 // pred_region
        _
      $region28: #{deep_classifier_forward.1} parent=11 // pred_fallthru
        _
      // Predicated region
      $region29: #{deep_classifier_forward.1} parent=11 // pred_check
        %p240 = pneg %p145
      $region30: #{deep_classifier_forward.1} parent=11 // pred_check_branch
        %242 = sbr.rel (%p240) target = $region32
      $region31: #{deep_classifier_forward.1} parent=11 // pred_region
        _
      $region32: #{deep_classifier_forward.1} parent=11 // pred_fallthru
        _
      // Predicated region
      $region33: #{deep_classifier_forward.1} parent=11 // pred_check
        %p243 = pneg %p166
      $region34: #{deep_classifier_forward.1} parent=11 // pred_check_branch
        %245 = sbr.rel (%p243) target = $region36
      $region35: #{deep_classifier_forward.1} parent=11 // pred_region
        _
      $region36: #{deep_classifier_forward.1} parent=11 // pred_fallthru
        _
      // Predicated region
      $region37: #{deep_classifier_forward.1} parent=11 // pred_check
        %p246 = pneg %p187
      $region38: #{deep_classifier_forward.1} parent=11 // pred_check_branch
        %248 = sbr.rel (%p246) target = $region40
      $region39: #{deep_classifier_forward.1} parent=11 // pred_region
        _
      $region40: #{deep_classifier_forward.1} parent=11 // pred_fallthru
        _
    $region12: #{deep_classifier_forward.1} parent=5 // pred_fallthru
      _
    %p249 = scmp.lt.s32.totalorder %s14, 2
    // Predicated region
    $region41: #{deep_classifier_forward.1} parent=5 // pred_check
      %p250 = pneg %p249
    $region42: #{deep_classifier_forward.1} parent=5 // pred_check_branch
      %252 = sbr.rel (%p250) target = $region44
    $region43: #{deep_classifier_forward.1} parent=5 // pred_region
      // Predicated region
      $region45: #{deep_classifier_forward.1} parent=43 // pred_check
        %p253 = pneg %p34
      $region46: #{deep_classifier_forward.1} parent=43 // pred_check_branch
        %255 = sbr.rel (%p253) target = $region48
      $region47: #{deep_classifier_forward.1} parent=43 // pred_region
        %p256 = scmp.lt.s32.totalorder %s14, 1
        %s257 = scalar_select %p256, %s14, 1
        %s258 = smul.addr %s257, 2
        %s259 = smul.addr %s258, 4
        %s260 = scalar_lea.vmem %s0, %s259
      $region48: #{deep_classifier_forward.1} parent=43 // pred_fallthru
        _
    $region44: #{deep_classifier_forward.1} parent=5 // pred_fallthru
      _
    %p261 = scmp.le.s32.totalorder 1, %s14
    %p262 = scmp.lt.s32.totalorder %s14, 3
    %p263 = pnand %p261, %p262
    %p264 = pneg %p263
    // Predicated region
    $region49: #{deep_classifier_forward.1} parent=5 // pred_check
      _
    $region50: #{deep_classifier_forward.1} parent=5 // pred_check_branch
      %266 = sbr.rel (%p263) target = $region52
    $region51: #{deep_classifier_forward.1} parent=5 // pred_region
      %s267 = ssub.s32 %s14, 1
      %p268 = scmp.lt.s32.totalorder %s19, 1
      %s269 = scalar_select %p268, %s19, 1
      %s270 = smul.addr %s269, 2
      %s271 = smul.addr %s270, 4
      %s272 = scalar_lea.vmem %s0, %s271
      %p273 = pneg %p40
      %p274 = pneg %p37
      %p275 = pneg %p61
      %p276 = pneg %p58
      %p277 = pneg %p82
      %p278 = pneg %p79
      %p279 = pneg %p103
      %p280 = pneg %p100
      %p281 = pneg %p124
      %p282 = pneg %p121
      %p283 = pneg %p145
      %p284 = pneg %p142
      %p285 = pneg %p166
      %p286 = pneg %p163
      %p287 = pneg %p187
      %p288 = pneg %p184
      %p289 = pneg %p213
      %p290 = pneg %p210
      %p291 = scmp.lt.s32.totalorder %s19, 1
      %s292 = scalar_select %p291, %s19, 1
      %s293 = smul.addr %s292, 2
      %s294 = smul.addr %s293, 8
      %s295 = scalar_lea.vmem %s8, %s294
      %p296 = scmp.lt.s32.totalorder %s19, 1
      %s297 = scalar_select %p296, %s19, 1
      %s298 = smul.addr %s297, 2
      %s299 = smul.addr %s298, 4
      %s300 = scalar_lea.vmem %s0, %s299
      %p301 = scmp.lt.s32.totalorder %s19, 1
      %s302 = scalar_select %p301, %s19, 1
      %s303 = smul.addr %s302, 2
      %s304 = smul.addr %s303, 8
      %s305 = scalar_lea.vmem %s8, %s304
      %v306 = vld [vmem:[%s300] sm:$0xff]
      %v307 = vld [vmem:[%s7] ss:$8 sm:$0x3]
      %v309 = vcombine.high %v306, %v306
      %311 = vrot.lane.b32.xlu0 %v306, 17
      %v312 = vpop.permute.xlu0 %311
      %313 = vrot.lane.b32.xlu0 %v309, 17
      %v314 = vpop.permute.xlu0 %313
      %v315 = vlaneseq
      %v316 = vand.u32 %v315, 127
      %vm317 = vcmp.lt.s32.totalorder %v316, 17
      %v318 = vsel %vm317, %v312, %v314
      %v319 = vsel %vm317, %v314, %v312
      %v321 = vlaneseq
      %v322 = vshrl.u32 %v321, 7
      %v323 = vsub.s32 0, %v322
      %v324 = vrot.slane %v307, %v323
      %v325 = vlaneseq
      %v326 = vshrl.u32 %v325, 7
      %v327 = vsub.s32 1, %v326
      %v328 = vrot.slane %v307, %v327
      %v331 = vmul.f32 %v319, %v324
      %v332 = vmul.f32 %v318, %v328
      %333 = vst [vmem:[#allocation2] sm:$0xf] %v331
      %334 = vst [vmem:[#allocation2 + $0x8] sm:$0xf] %v332
      %s335 = scalar_lea.vmem %s7, 1
      %v336 = vld [vmem:[%s335] ss:$8 sm:$0x3]
      %337 = vrot.lane.b32.xlu0 %v306, 16
      %v338 = vpop.permute.xlu0 %337
      %339 = vrot.lane.b32.xlu0 %v309, 16
      %v340 = vpop.permute.xlu0 %339
      %vm341 = vcmp.lt.s32.totalorder %v316, 16
      %v342 = vsel %vm341, %v338, %v340
      %v343 = vsel %vm341, %v340, %v338
      %v345 = vlaneseq
      %v346 = vshrl.u32 %v345, 7
      %v347 = vsub.s32 0, %v346
      %v348 = vrot.slane %v336, %v347
      %v349 = vlaneseq
      %v350 = vshrl.u32 %v349, 7
      %v351 = vsub.s32 1, %v350
      %v352 = vrot.slane %v336, %v351
      %v355 = vmul.f32 %v343, %v348
      %v356 = vmul.f32 %v342, %v352
      %v359 = vrot.slane %v355, 4
      %v360 = vrot.slane %v356, 4
      %363 = vst [vmem:[#allocation2] sm:$0xf0] %v359
      %364 = vst [vmem:[#allocation2 + $0x8] sm:$0xf0] %v360
      %s365 = scalar_lea.vmem %s7, 2
      %v366 = vld [vmem:[%s365] ss:$8 sm:$0x3]
      %367 = vrot.lane.b32.xlu0 %v306, 15
      %v368 = vpop.permute.xlu0 %367
      %369 = vrot.lane.b32.xlu0 %v309, 15
      %v370 = vpop.permute.xlu0 %369
      %vm371 = vcmp.lt.s32.totalorder %v316, 15
      %v372 = vsel %vm371, %v368, %v370
      %v373 = vsel %vm371, %v370, %v368
      %v375 = vlaneseq
      %v376 = vshrl.u32 %v375, 7
      %v377 = vsub.s32 0, %v376
      %v378 = vrot.slane %v366, %v377
      %v379 = vlaneseq
      %v380 = vshrl.u32 %v379, 7
      %v381 = vsub.s32 1, %v380
      %v382 = vrot.slane %v366, %v381
      %v385 = vmul.f32 %v373, %v378
      %v386 = vmul.f32 %v372, %v382
      %387 = vst [vmem:[#allocation2 + $0x10] sm:$0xf] %v385
      %388 = vst [vmem:[#allocation2 + $0x18] sm:$0xf] %v386
      %s389 = scalar_lea.vmem %s7, 3
      %v390 = vld [vmem:[%s389] ss:$8 sm:$0x3]
      %391 = vrot.lane.b32.xlu0 %v306, 1
      %v392 = vpop.permute.xlu0 %391
      %393 = vrot.lane.b32.xlu0 %v309, 1
      %v394 = vpop.permute.xlu0 %393
      %vm395 = vcmp.lt.s32.totalorder %v316, 1
      %v396 = vsel %vm395, %v392, %v394
      %v397 = vsel %vm395, %v394, %v392
      %v399 = vlaneseq
      %v400 = vshrl.u32 %v399, 7
      %v401 = vsub.s32 0, %v400
      %v402 = vrot.slane %v390, %v401
      %v403 = vlaneseq
      %v404 = vshrl.u32 %v403, 7
      %v405 = vsub.s32 1, %v404
      %v406 = vrot.slane %v390, %v405
      %v409 = vmul.f32 %v397, %v402
      %v410 = vmul.f32 %v396, %v406
      %v413 = vrot.slane %v409, 4
      %v414 = vrot.slane %v410, 4
      %417 = vst [vmem:[#allocation2 + $0x10] sm:$0xf0] %v413
      %418 = vst [vmem:[#allocation2 + $0x18] sm:$0xf0] %v414
      %s419 = scalar_lea.vmem %s7, 4
      %v420 = vld [vmem:[%s419] ss:$8 sm:$0x3]
      %v422 = vlaneseq
      %v423 = vshrl.u32 %v422, 7
      %v424 = vsub.s32 0, %v423
      %v425 = vrot.slane %v420, %v424
      %v426 = vlaneseq
      %v427 = vshrl.u32 %v426, 7
      %v428 = vsub.s32 1, %v427
      %v429 = vrot.slane %v420, %v428
      %v430 = vcombine.low %v425, %v429
      %v432 = vmul.f32 %v306, %v430
      %v434 = vcombine.high %v432, %v432
      %436 = vst [vmem:[#allocation2 + $0x20] sm:$0xf] %v432
      %437 = vst [vmem:[#allocation2 + $0x28] sm:$0xf] %v434
      %s438 = scalar_lea.vmem %s7, 5
      %v439 = vld [vmem:[%s438] ss:$8 sm:$0x3]
      %440 = vrot.lane.b32.xlu0 %v306, 127
      %v441 = vpop.permute.xlu0 %440
      %442 = vrot.lane.b32.xlu0 %v309, 127
      %v443 = vpop.permute.xlu0 %442
      %vm444 = vcmp.lt.s32.totalorder %v316, 127
      %v445 = vsel %vm444, %v441, %v443
      %v446 = vsel %vm444, %v443, %v441
      %v448 = vlaneseq
      %v449 = vshrl.u32 %v448, 7
      %v450 = vsub.s32 0, %v449
      %v451 = vrot.slane %v439, %v450
      %v452 = vlaneseq
      %v453 = vshrl.u32 %v452, 7
      %v454 = vsub.s32 1, %v453
      %v455 = vrot.slane %v439, %v454
      %v458 = vmul.f32 %v445, %v451
      %v459 = vmul.f32 %v446, %v455
      %v462 = vrot.slane %v458, 4
      %v463 = vrot.slane %v459, 4
      %466 = vst [vmem:[#allocation2 + $0x20] sm:$0xf0] %v462
      %467 = vst [vmem:[#allocation2 + $0x28] sm:$0xf0] %v463
      %s468 = scalar_lea.vmem %s7, 6
      %v469 = vld [vmem:[%s468] ss:$8 sm:$0x3]
      %470 = vrot.lane.b32.xlu0 %v306, 113
      %v471 = vpop.permute.xlu0 %470
      %472 = vrot.lane.b32.xlu0 %v309, 113
      %v473 = vpop.permute.xlu0 %472
      %vm474 = vcmp.lt.s32.totalorder %v316, 113
      %v475 = vsel %vm474, %v471, %v473
      %v476 = vsel %vm474, %v473, %v471
      %v478 = vlaneseq
      %v479 = vshrl.u32 %v478, 7
      %v480 = vsub.s32 0, %v479
      %v481 = vrot.slane %v469, %v480
      %v482 = vlaneseq
      %v483 = vshrl.u32 %v482, 7
      %v484 = vsub.s32 1, %v483
      %v485 = vrot.slane %v469, %v484
      %v488 = vmul.f32 %v475, %v481
      %v489 = vmul.f32 %v476, %v485
      %490 = vst [vmem:[#allocation2 + $0x30] sm:$0xf] %v488
      %491 = vst [vmem:[#allocation2 + $0x38] sm:$0xf] %v489
      %s492 = scalar_lea.vmem %s7, 7
      %v493 = vld [vmem:[%s492] ss:$8 sm:$0x3]
      %494 = vrot.lane.b32.xlu0 %v306, 112
      %v495 = vpop.permute.xlu0 %494
      %496 = vrot.lane.b32.xlu0 %v309, 112
      %v497 = vpop.permute.xlu0 %496
      %vm498 = vcmp.lt.s32.totalorder %v316, 112
      %v499 = vsel %vm498, %v495, %v497
      %v500 = vsel %vm498, %v497, %v495
      %v502 = vlaneseq
      %v503 = vshrl.u32 %v502, 7
      %v504 = vsub.s32 0, %v503
      %v505 = vrot.slane %v493, %v504
      %v506 = vlaneseq
      %v507 = vshrl.u32 %v506, 7
      %v508 = vsub.s32 1, %v507
      %v509 = vrot.slane %v493, %v508
      %v512 = vmul.f32 %v499, %v505
      %v513 = vmul.f32 %v500, %v509
      %v516 = vrot.slane %v512, 4
      %v517 = vrot.slane %v513, 4
      %520 = vst [vmem:[#allocation2 + $0x30] sm:$0xf0] %v516
      %521 = vst [vmem:[#allocation2 + $0x38] sm:$0xf0] %v517
      %s522 = scalar_lea.vmem %s7, 16
      %v523 = vld [vmem:[%s522] ss:$8 sm:$0x3]
      %524 = vrot.lane.b32.xlu0 %v306, 111
      %v525 = vpop.permute.xlu0 %524
      %526 = vrot.lane.b32.xlu0 %v309, 111
      %v527 = vpop.permute.xlu0 %526
      %vm528 = vcmp.lt.s32.totalorder %v316, 111
      %v529 = vsel %vm528, %v525, %v527
      %v530 = vsel %vm528, %v527, %v525
      %v532 = vlaneseq
      %v533 = vshrl.u32 %v532, 7
      %v534 = vsub.s32 0, %v533
      %v535 = vrot.slane %v523, %v534
      %v536 = vlaneseq
      %v537 = vshrl.u32 %v536, 7
      %v538 = vsub.s32 1, %v537
      %v539 = vrot.slane %v523, %v538
      %v542 = vmul.f32 %v529, %v535
      %v543 = vmul.f32 %v530, %v539
      %544 = vst [vmem:[#allocation2 + $0x40] sm:$0xf] %v542
      %545 = vst [vmem:[#allocation2 + $0x48] sm:$0xf] %v543
      %v546 = vld [vmem:[%s1] sm:$0xff]
      %v547 = vld [vmem:[#allocation2] sm:$0xff]
      %v548 = vld [vmem:[#allocation2 + $0x8] sm:$0xff]
      %v549 = vld [vmem:[#allocation2 + $0x10] sm:$0xff]
      %v550 = vld [vmem:[#allocation2 + $0x18] sm:$0xff]
      %v551 = vld [vmem:[#allocation2 + $0x20] sm:$0xff]
      %v552 = vld [vmem:[#allocation2 + $0x28] sm:$0xff]
      %v553 = vld [vmem:[#allocation2 + $0x30] sm:$0xff]
      %v554 = vld [vmem:[#allocation2 + $0x38] sm:$0xff]
      %v555 = vld [vmem:[#allocation2 + $0x40] sm:$0xf]
      %v556 = vld [vmem:[#allocation2 + $0x48] sm:$0xf]
      %v557 = vld [vmem:[%s2] sm:$0xff]
      %559 = vset.pattern.permute.xlu0 0
      %560 = vperm.xlu0 %559, %v557
      %v561 = vpop.permute.xlu0 %560
      %vm563 = vcmask 293888
      %v565 = vsel %vm563, %v546, 0
      %vm567 = vcmask 1043456
      %v569 = vsel %vm567, %v555, 0
      %v572 = vsel %vm567, %v556, 0
      %574 = vmatprep.subr.mxu0 %v548
      %575 = vmatpush1.msra.mxu0 %v547
      %576 = vmatprep.subr.mxu0 %v550
      %577 = vmatpush1.msra.mxu0 %v549
      %578 = vmatprep.subr.mxu0 %v552
      %579 = vmatpush1.msra.mxu0 %v551
      %580 = vmatprep.subr.mxu0 %v554
      %581 = vmatpush1.msra.mxu0 %v553
      %582 = vmatprep.subr.mxu0 %v572
      %583 = vmatpush1.msra.mxu0 %v569
      %584 = vmatprep.subr.mxu0 0.0
      %585 = vmatpush1.msra.mxu0 0.0
      %586 = vmatprep.subr.mxu0 0.0
      %587 = vmatpush1.msra.mxu0 0.0
      %588 = vmatprep.subr.mxu0 0.0
      %589 = vmatpush1.msra.mxu0 0.0
      %590 = vmatprep.subr.mxu0 0.0
      %591 = vmatpush1.msra.mxu0 0.0
      %592 = vmatprep.subr.mxu0 0.0
      %593 = vmatpush1.msra.mxu0 0.0
      %594 = vmatprep.subr.mxu0 0.0
      %595 = vmatpush1.msra.mxu0 0.0
      %596 = vmatprep.subr.mxu0 0.0
      %597 = vmatpush1.msra.mxu0 0.0
      %598 = vmatprep.subr.mxu0 0.0
      %599 = vmatpush1.msra.mxu0 0.0
      %600 = vmatprep.subr.mxu0 0.0
      %601 = vmatpush1.msra.mxu0 0.0
      %602 = vmatprep.subr.mxu0 0.0
      %603 = vmatpush1.msra.mxu0 0.0
      %604 = vmatprep.subr.mxu0 0.0
      %605 = vmatpush1.msra.mxu0 0.0
      %606 = vmatprep.subr.mxu0 0.0
      %607 = vmatpush1.msra.mxu0 0.0
      %608 = vmatprep.subr.mxu0 0.0
      %609 = vmatpush1.msra.mxu0 0.0
      %610 = vmatprep.subr.mxu0 0.0
      %611 = vmatpush1.msra.mxu0 0.0
      %612 = vmatprep.subr.mxu0 0.0
      %613 = vmatpush1.msra.mxu0 0.0
      %614 = vmatprep.subr.mxu0 0.0
      %615 = vmatpush1.msra.mxu0 0.0
      %616 = vmatprep.subr.mxu0 0.0
      %617 = vmatpush1.msra.mxu0 0.0
      %618 = vmatprep.subr.mxu0 0.0
      %619 = vmatpush1.msra.mxu0 0.0
      %620 = vmatprep.subr.mxu0 0.0
      %621 = vmatpush1.msra.mxu0 0.0
      %622 = vmatprep.subr.mxu0 0.0
      %623 = vmatpush1.msra.mxu0 0.0
      %624 = vmatprep.subr.mxu0 0.0
      %625 = vmatpush1.msra.mxu0 0.0
      %626 = vmatprep.subr.mxu0 0.0
      %627 = vmatpush1.msra.mxu0 0.0
      %628 = vmatprep.subr.mxu0 0.0
      %629 = vmatpush1.msra.mxu0 0.0
      %630 = vmatprep.subr.mxu0 0.0
      %631 = vmatpush1.msra.mxu0 0.0
      %632 = vmatprep.subr.mxu0 0.0
      %633 = vmatpush1.msra.mxu0 0.0
      %634 = vmatprep.subr.mxu0 0.0
      %635 = vmatpush1.msra.mxu0 0.0
      %636 = vmatprep.subr.mxu0 0.0
      %637 = vmatpush1.msra.mxu0 0.0
      %638 = vmatprep.mubr.f32.mxu0 0.0
      %639 = vmatmul.mubr.f32.gmra.mrb[0].mxu0 %v565
      %v640 = vpop.f32.mrb[0].mxu0
      %v641 = vadd.f32 %v561, %v640
      %v642 = vpop.f32.mrb[0].mxu0
      %v643 = vadd.f32 %v561, %v642
      %644 = vdwg.mxu0
      %v645 = vmax.f32 %v641, 0.0
      %v646 = vmax.f32 %v643, 0.0
      %v647 = vld [vmem:[%s7] ss:$8 sm:$0x3]
      %648 = vrot.lane.b32.xlu0 %v645, 17
      %v649 = vpop.permute.xlu0 %648
      %650 = vrot.lane.b32.xlu0 %v646, 17
      %v651 = vpop.permute.xlu0 %650
      %v652 = vsel %vm317, %v649, %v651
      %v653 = vsel %vm317, %v651, %v649
      %v655 = vlaneseq
      %v656 = vshrl.u32 %v655, 7
      %v657 = vsub.s32 0, %v656
      %v658 = vrot.slane %v647, %v657
      %v659 = vlaneseq
      %v660 = vshrl.u32 %v659, 7
      %v661 = vsub.s32 1, %v660
      %v662 = vrot.slane %v647, %v661
      %v665 = vmul.f32 %v653, %v658
      %v666 = vmul.f32 %v652, %v662
      %667 = vst [vmem:[#allocation2] sm:$0xff] %v665
      %668 = vst [vmem:[#allocation2 + $0x8] sm:$0xff] %v666
      %v669 = vld [vmem:[%s335] ss:$8 sm:$0x3]
      %670 = vrot.lane.b32.xlu0 %v645, 16
      %v671 = vpop.permute.xlu0 %670
      %672 = vrot.lane.b32.xlu0 %v646, 16
      %v673 = vpop.permute.xlu0 %672
      %v674 = vsel %vm341, %v671, %v673
      %v675 = vsel %vm341, %v673, %v671
      %v677 = vlaneseq
      %v678 = vshrl.u32 %v677, 7
      %v679 = vsub.s32 0, %v678
      %v680 = vrot.slane %v669, %v679
      %v681 = vlaneseq
      %v682 = vshrl.u32 %v681, 7
      %v683 = vsub.s32 1, %v682
      %v684 = vrot.slane %v669, %v683
      %v687 = vmul.f32 %v675, %v680
      %v688 = vmul.f32 %v674, %v684
      %689 = vst [vmem:[#allocation2 + $0x10] sm:$0xff] %v687
      %690 = vst [vmem:[#allocation2 + $0x18] sm:$0xff] %v688
      %v691 = vld [vmem:[%s365] ss:$8 sm:$0x3]
      %692 = vrot.lane.b32.xlu0 %v645, 15
      %v693 = vpop.permute.xlu0 %692
      %694 = vrot.lane.b32.xlu0 %v646, 15
      %v695 = vpop.permute.xlu0 %694
      %v696 = vsel %vm371, %v693, %v695
      %v697 = vsel %vm371, %v695, %v693
      %v699 = vlaneseq
      %v700 = vshrl.u32 %v699, 7
      %v701 = vsub.s32 0, %v700
      %v702 = vrot.slane %v691, %v701
      %v703 = vlaneseq
      %v704 = vshrl.u32 %v703, 7
      %v705 = vsub.s32 1, %v704
      %v706 = vrot.slane %v691, %v705
      %v709 = vmul.f32 %v697, %v702
      %v710 = vmul.f32 %v696, %v706
      %711 = vst [vmem:[#allocation2 + $0x20] sm:$0xff] %v709
      %712 = vst [vmem:[#allocation2 + $0x28] sm:$0xff] %v710
      %v713 = vld [vmem:[%s389] ss:$8 sm:$0x3]
      %714 = vrot.lane.b32.xlu0 %v645, 1
      %v715 = vpop.permute.xlu0 %714
      %716 = vrot.lane.b32.xlu0 %v646, 1
      %v717 = vpop.permute.xlu0 %716
      %v718 = vsel %vm395, %v715, %v717
      %v719 = vsel %vm395, %v717, %v715
      %v721 = vlaneseq
      %v722 = vshrl.u32 %v721, 7
      %v723 = vsub.s32 0, %v722
      %v724 = vrot.slane %v713, %v723
      %v725 = vlaneseq
      %v726 = vshrl.u32 %v725, 7
      %v727 = vsub.s32 1, %v726
      %v728 = vrot.slane %v713, %v727
      %v731 = vmul.f32 %v719, %v724
      %v732 = vmul.f32 %v718, %v728
      %733 = vst [vmem:[#allocation2 + $0x30] sm:$0xff] %v731
      %734 = vst [vmem:[#allocation2 + $0x38] sm:$0xff] %v732
      %v735 = vld [vmem:[%s419] ss:$8 sm:$0x3]
      %v737 = vlaneseq
      %v738 = vshrl.u32 %v737, 7
      %v739 = vsub.s32 0, %v738
      %v740 = vrot.slane %v735, %v739
      %v741 = vlaneseq
      %v742 = vshrl.u32 %v741, 7
      %v743 = vsub.s32 1, %v742
      %v744 = vrot.slane %v735, %v743
      %v747 = vmul.f32 %v645, %v740
      %v748 = vmul.f32 %v646, %v744
      %749 = vst [vmem:[#allocation2 + $0x40] sm:$0xff] %v747
      %750 = vst [vmem:[#allocation2 + $0x48] sm:$0xff] %v748
      %v751 = vld [vmem:[%s438] ss:$8 sm:$0x3]
      %752 = vrot.lane.b32.xlu0 %v645, 127
      %v753 = vpop.permute.xlu0 %752
      %754 = vrot.lane.b32.xlu0 %v646, 127
      %v755 = vpop.permute.xlu0 %754
      %v756 = vsel %vm444, %v753, %v755
      %v757 = vsel %vm444, %v755, %v753
      %v759 = vlaneseq
      %v760 = vshrl.u32 %v759, 7
      %v761 = vsub.s32 0, %v760
      %v762 = vrot.slane %v751, %v761
      %v763 = vlaneseq
      %v764 = vshrl.u32 %v763, 7
      %v765 = vsub.s32 1, %v764
      %v766 = vrot.slane %v751, %v765
      %v769 = vmul.f32 %v756, %v762
      %v770 = vmul.f32 %v757, %v766
      %771 = vst [vmem:[#allocation2 + $0x50] sm:$0xff] %v769
      %772 = vst [vmem:[#allocation2 + $0x58] sm:$0xff] %v770
      %v773 = vld [vmem:[%s468] ss:$8 sm:$0x3]
      %774 = vrot.lane.b32.xlu0 %v645, 113
      %v775 = vpop.permute.xlu0 %774
      %776 = vrot.lane.b32.xlu0 %v646, 113
      %v777 = vpop.permute.xlu0 %776
      %v778 = vsel %vm474, %v775, %v777
      %v779 = vsel %vm474, %v777, %v775
      %v781 = vlaneseq
      %v782 = vshrl.u32 %v781, 7
      %v783 = vsub.s32 0, %v782
      %v784 = vrot.slane %v773, %v783
      %v785 = vlaneseq
      %v786 = vshrl.u32 %v785, 7
      %v787 = vsub.s32 1, %v786
      %v788 = vrot.slane %v773, %v787
      %v791 = vmul.f32 %v778, %v784
      %v792 = vmul.f32 %v779, %v788
      %793 = vst [vmem:[#allocation2 + $0x60] sm:$0xff] %v791
      %794 = vst [vmem:[#allocation2 + $0x68] sm:$0xff] %v792
      %v795 = vld [vmem:[%s492] ss:$8 sm:$0x3]
      %796 = vrot.lane.b32.xlu0 %v645, 112
      %v797 = vpop.permute.xlu0 %796
      %798 = vrot.lane.b32.xlu0 %v646, 112
      %v799 = vpop.permute.xlu0 %798
      %v800 = vsel %vm498, %v797, %v799
      %v801 = vsel %vm498, %v799, %v797
      %v803 = vlaneseq
      %v804 = vshrl.u32 %v803, 7
      %v805 = vsub.s32 0, %v804
      %v806 = vrot.slane %v795, %v805
      %v807 = vlaneseq
      %v808 = vshrl.u32 %v807, 7
      %v809 = vsub.s32 1, %v808
      %v810 = vrot.slane %v795, %v809
      %v813 = vmul.f32 %v800, %v806
      %v814 = vmul.f32 %v801, %v810
      %815 = vst [vmem:[#allocation2 + $0x70] sm:$0xff] %v813
      %816 = vst [vmem:[#allocation2 + $0x78] sm:$0xff] %v814
      %v817 = vld [vmem:[%s522] ss:$8 sm:$0x3]
      %818 = vrot.lane.b32.xlu0 %v645, 111
      %v819 = vpop.permute.xlu0 %818
      %820 = vrot.lane.b32.xlu0 %v646, 111
      %v821 = vpop.permute.xlu0 %820
      %v822 = vsel %vm528, %v819, %v821
      %v823 = vsel %vm528, %v821, %v819
      %v825 = vlaneseq
      %v826 = vshrl.u32 %v825, 7
      %v827 = vsub.s32 0, %v826
      %v828 = vrot.slane %v817, %v827
      %v829 = vlaneseq
      %v830 = vshrl.u32 %v829, 7
      %v831 = vsub.s32 1, %v830
      %v832 = vrot.slane %v817, %v831
      %v835 = vmul.f32 %v822, %v828
      %v836 = vmul.f32 %v823, %v832
      %837 = vst [vmem:[#allocation2 + $0x80] sm:$0xff] %v835
      %838 = vst [vmem:[#allocation2 + $0x88] sm:$0xff] %v836
      %v839 = vld [vmem:[%s3] sm:$0xff]
      %v840 = vld [vmem:[%s3 + $0x8] sm:$0xff]
      %v841 = vld [vmem:[#allocation2] sm:$0xff]
      %v842 = vld [vmem:[#allocation2 + $0x8] sm:$0xff]
      %v843 = vld [vmem:[#allocation2 + $0x10] sm:$0xff]
      %v844 = vld [vmem:[#allocation2 + $0x18] sm:$0xff]
      %v845 = vld [vmem:[#allocation2 + $0x20] sm:$0xff]
      %v846 = vld [vmem:[#allocation2 + $0x28] sm:$0xff]
      %v847 = vld [vmem:[#allocation2 + $0x30] sm:$0xff]
      %v848 = vld [vmem:[#allocation2 + $0x38] sm:$0xff]
      %v849 = vld [vmem:[#allocation2 + $0x40] sm:$0xff]
      %v850 = vld [vmem:[#allocation2 + $0x48] sm:$0xff]
      %v851 = vld [vmem:[#allocation2 + $0x50] sm:$0xff]
      %v852 = vld [vmem:[#allocation2 + $0x58] sm:$0xff]
      %v853 = vld [vmem:[#allocation2 + $0x60] sm:$0xff]
      %v854 = vld [vmem:[#allocation2 + $0x68] sm:$0xff]
      %v855 = vld [vmem:[#allocation2 + $0x70] sm:$0xff]
      %v856 = vld [vmem:[#allocation2 + $0x78] sm:$0xff]
      %v857 = vld [vmem:[#allocation2 + $0x80] sm:$0xff]
      %v858 = vld [vmem:[#allocation2 + $0x88] sm:$0xff]
      %v859 = vld [vmem:[%s4] sm:$0xff]
      %v860 = vld [vmem:[%s4 + $0x8] sm:$0xff]
      %862 = vset.pattern.permute.xlu0 0
      %863 = vperm.xlu0 %862, %v859
      %v864 = vpop.permute.xlu0 %863
      %867 = vset.pattern.permute.xlu0 0
      %868 = vperm.xlu0 %867, %v860
      %v869 = vpop.permute.xlu0 %868
      %vm871 = vcmask 588800
      %v873 = vsel %vm871, %v839, 0
      %v876 = vsel %vm871, %v840, 0
      %878 = vmatprep.subr.mxu0 %v842
      %879 = vmatpush1.msra.mxu0 %v841
      %880 = vmatprep.subr.mxu0 %v844
      %881 = vmatpush1.msra.mxu0 %v843
      %882 = vmatprep.subr.mxu0 %v846
      %883 = vmatpush1.msra.mxu0 %v845
      %884 = vmatprep.subr.mxu0 %v848
      %885 = vmatpush1.msra.mxu0 %v847
      %886 = vmatprep.subr.mxu0 %v850
      %887 = vmatpush1.msra.mxu0 %v849
      %888 = vmatprep.subr.mxu0 %v852
      %889 = vmatpush1.msra.mxu0 %v851
      %890 = vmatprep.subr.mxu0 %v854
      %891 = vmatpush1.msra.mxu0 %v853
      %892 = vmatprep.subr.mxu0 %v856
      %893 = vmatpush1.msra.mxu0 %v855
      %894 = vmatprep.subr.mxu0 %v858
      %895 = vmatpush1.msra.mxu0 %v857
      %896 = vmatprep.subr.mxu0 0.0
      %897 = vmatpush1.msra.mxu0 0.0
      %898 = vmatprep.subr.mxu0 0.0
      %899 = vmatpush1.msra.mxu0 0.0
      %900 = vmatprep.subr.mxu0 0.0
      %901 = vmatpush1.msra.mxu0 0.0
      %902 = vmatprep.subr.mxu0 0.0
      %903 = vmatpush1.msra.mxu0 0.0
      %904 = vmatprep.subr.mxu0 0.0
      %905 = vmatpush1.msra.mxu0 0.0
      %906 = vmatprep.subr.mxu0 0.0
      %907 = vmatpush1.msra.mxu0 0.0
      %908 = vmatprep.subr.mxu0 0.0
      %909 = vmatpush1.msra.mxu0 0.0
      %910 = vmatprep.subr.mxu0 0.0
      %911 = vmatpush1.msra.mxu0 0.0
      %912 = vmatprep.subr.mxu0 0.0
      %913 = vmatpush1.msra.mxu0 0.0
      %914 = vmatprep.subr.mxu0 0.0
      %915 = vmatpush1.msra.mxu0 0.0
      %916 = vmatprep.subr.mxu0 0.0
      %917 = vmatpush1.msra.mxu0 0.0
      %918 = vmatprep.subr.mxu0 0.0
      %919 = vmatpush1.msra.mxu0 0.0
      %920 = vmatprep.subr.mxu0 0.0
      %921 = vmatpush1.msra.mxu0 0.0
      %922 = vmatprep.subr.mxu0 0.0
      %923 = vmatpush1.msra.mxu0 0.0
      %924 = vmatprep.subr.mxu0 0.0
      %925 = vmatpush1.msra.mxu0 0.0
      %926 = vmatprep.subr.mxu0 0.0
      %927 = vmatpush1.msra.mxu0 0.0
      %928 = vmatprep.subr.mxu0 0.0
      %929 = vmatpush1.msra.mxu0 0.0
      %930 = vmatprep.subr.mxu0 0.0
      %931 = vmatpush1.msra.mxu0 0.0
      %932 = vmatprep.subr.mxu0 0.0
      %933 = vmatpush1.msra.mxu0 0.0
      %934 = vmatprep.subr.mxu0 0.0
      %935 = vmatpush1.msra.mxu0 0.0
      %936 = vmatprep.subr.mxu0 0.0
      %937 = vmatpush1.msra.mxu0 0.0
      %938 = vmatprep.subr.mxu0 0.0
      %939 = vmatpush1.msra.mxu0 0.0
      %940 = vmatprep.subr.mxu0 0.0
      %941 = vmatpush1.msra.mxu0 0.0
      %942 = vmatprep.mubr.f32.mxu0 0.0
      %943 = vmatmul.mubr.f32.gmra.mrb[0].mxu0 %v873
      %v944 = vpop.f32.mrb[0].mxu0
      %v945 = vadd.f32 %v864, %v944
      %v946 = vpop.f32.mrb[0].mxu0
      %v947 = vadd.f32 %v864, %v946
      %948 = vmatprep.mubr.f32.mxu0 0.0
      %949 = vmatmul.mubr.f32.gmra.mrb[0].mxu0 %v876
      %v950 = vpop.f32.mrb[0].mxu0
      %v951 = vadd.f32 %v869, %v950
      %v952 = vpop.f32.mrb[0].mxu0
      %v953 = vadd.f32 %v869, %v952
      %954 = vdwg.mxu0
      %v955 = vmax.f32 %v945, 0.0
      %v956 = vmax.f32 %v947, 0.0
      %v957 = vmax.f32 %v951, 0.0
      %v958 = vmax.f32 %v953, 0.0
      %v959 = vld [vmem:[%s5] sm:$0xff]
      %v960 = vld [vmem:[%s5 + $0x8] sm:$0xff]
      %vm961 = vcmask 130048
      %v963 = vsel %vm961, %v959, 0
      %v966 = vsel %vm961, %v960, 0
      %968 = vmatprep.subr.mxu0 %v956
      %969 = vmatpush1.msra.mxu0 %v955
      %970 = vmatprep.subr.mxu0 %v958
      %971 = vmatpush1.msra.mxu0 %v957
      %972 = vmatprep.subr.mxu0 0.0
      %973 = vmatpush1.msra.mxu0 0.0
      %974 = vmatprep.subr.mxu0 0.0
      %975 = vmatpush1.msra.mxu0 0.0
      %976 = vmatprep.subr.mxu0 0.0
      %977 = vmatpush1.msra.mxu0 0.0
      %978 = vmatprep.subr.mxu0 0.0
      %979 = vmatpush1.msra.mxu0 0.0
      %980 = vmatprep.subr.mxu0 0.0
      %981 = vmatpush1.msra.mxu0 0.0
      %982 = vmatprep.subr.mxu0 0.0
      %983 = vmatpush1.msra.mxu0 0.0
      %984 = vmatprep.subr.mxu0 0.0
      %985 = vmatpush1.msra.mxu0 0.0
      %986 = vmatprep.subr.mxu0 0.0
      %987 = vmatpush1.msra.mxu0 0.0
      %988 = vmatprep.subr.mxu0 0.0
      %989 = vmatpush1.msra.mxu0 0.0
      %990 = vmatprep.subr.mxu0 0.0
      %991 = vmatpush1.msra.mxu0 0.0
      %992 = vmatprep.subr.mxu0 0.0
      %993 = vmatpush1.msra.mxu0 0.0
      %994 = vmatprep.subr.mxu0 0.0
      %995 = vmatpush1.msra.mxu0 0.0
      %996 = vmatprep.subr.mxu0 0.0
      %997 = vmatpush1.msra.mxu0 0.0
      %998 = vmatprep.subr.mxu0 0.0
      %999 = vmatpush1.msra.mxu0 0.0
      %1000 = vmatprep.subr.mxu0 0.0
      %1001 = vmatpush1.msra.mxu0 0.0
      %1002 = vmatprep.subr.mxu0 0.0
      %1003 = vmatpush1.msra.mxu0 0.0
      %1004 = vmatprep.subr.mxu0 0.0
      %1005 = vmatpush1.msra.mxu0 0.0
      %1006 = vmatprep.subr.mxu0 0.0
      %1007 = vmatpush1.msra.mxu0 0.0
      %1008 = vmatprep.subr.mxu0 0.0
      %1009 = vmatpush1.msra.mxu0 0.0
      %1010 = vmatprep.subr.mxu0 0.0
      %1011 = vmatpush1.msra.mxu0 0.0
      %1012 = vmatprep.subr.mxu0 0.0
      %1013 = vmatpush1.msra.mxu0 0.0
      %1014 = vmatprep.subr.mxu0 0.0
      %1015 = vmatpush1.msra.mxu0 0.0
      %1016 = vmatprep.subr.mxu0 0.0
      %1017 = vmatpush1.msra.mxu0 0.0
      %1018 = vmatprep.subr.mxu0 0.0
      %1019 = vmatpush1.msra.mxu0 0.0
      %1020 = vmatprep.subr.mxu0 0.0
      %1021 = vmatpush1.msra.mxu0 0.0
      %1022 = vmatprep.subr.mxu0 0.0
      %1023 = vmatpush1.msra.mxu0 0.0
      %1024 = vmatprep.subr.mxu0 0.0
      %1025 = vmatpush1.msra.mxu0 0.0
      %1026 = vmatprep.subr.mxu0 0.0
      %1027 = vmatpush1.msra.mxu0 0.0
      %1028 = vmatprep.subr.mxu0 0.0
      %1029 = vmatpush1.msra.mxu0 0.0
      %1030 = vmatprep.subr.mxu0 0.0
      %1031 = vmatpush1.msra.mxu0 0.0
      %1032 = vmatprep.mubr.f32.mxu0 0.0
      %1033 = vmatmul.mubr.f32.gmra.mrb[0].mxu0 %v963
      %v1034 = vpop.f32.mrb[0].mxu0
      %v1035 = vadd.f32 0.0, %v1034
      %v1036 = vpop.f32.mrb[0].mxu0
      %v1037 = vadd.f32 0.0, %v1036
      %1038 = vmatprep.mubr.f32.mxu0 0.0
      %1039 = vmatmul.mubr.f32.gmra.mrb[0].mxu0 %v966
      %v1040 = vpop.f32.mrb[0].mxu0
      %v1041 = vadd.f32 0.0, %v1040
      %v1042 = vpop.f32.mrb[0].mxu0
      %v1043 = vadd.f32 0.0, %v1042
      %1044 = vdwg.mxu0
      %v1045 = vadd.f32 %v1035, %v1037
      %1046 = vadd.xlane.f32.xlu0 %v1045
      %v1047 = vpop.xlane.xlu0 %1046
      %v1048 = vadd.f32 %v1041, %v1043
      %1049 = vadd.xlane.f32.xlu0 %v1048
      %v1050 = vpop.xlane.xlu0 %1049
      %v1051 = vmul.f32 %v1047, 0.00390625
      %v1052 = vmul.f32 %v1050, 0.00390625
      %v1053 = vld [vmem:[%s6] sm:$0xff]
      %v1054 = vld [vmem:[%s6 + $0x8] sm:$0xff]
      %v1055 = vadd.f32 %v1051, %v1053
      %v1056 = vadd.f32 %v1052, %v1054
      %vm1057 = vcmask 7168
      %1058 = vst.msk [vmem:[%s305] sm:$0xff] %vm1057, %v1055
      %1059 = vst.msk [vmem:[%s305 + $0x8] sm:$0xff] %vm1057, %v1056
      %p1060 = scmp.lt.s32.totalorder %s19, 1
      %s1061 = scalar_select %p1060, %s19, 1
      %s1062 = smul.addr %s1061, 2
      %s1063 = smul.addr %s1062, 8
      %s1064 = scalar_lea.vmem %s8, %s1063
      // Predicated region
      $region53: #{deep_classifier_forward.1} parent=51 // pred_check
        %p1065 = pneg %p210
      $region54: #{deep_classifier_forward.1} parent=51 // pred_check_branch
        %1067 = sbr.rel (%p1065) target = $region56
      $region55: #{deep_classifier_forward.1} parent=51 // pred_region
        _
      $region56: #{deep_classifier_forward.1} parent=51 // pred_fallthru
        _
    $region52: #{deep_classifier_forward.1} parent=5 // pred_fallthru
      _
    %p1068 = scmp.le.s32.totalorder 2, %s14
    // Predicated region
    $region57: #{deep_classifier_forward.1} parent=5 // pred_check
      %p1069 = pneg %p1068
    $region58: #{deep_classifier_forward.1} parent=5 // pred_check_branch
      %1071 = sbr.rel (%p1069) target = $region60
    $region59: #{deep_classifier_forward.1} parent=5 // pred_region
      %s1072 = ssub.s32 %s14, 2
      // Predicated region
      $region61: #{deep_classifier_forward.1} parent=59 // pred_check
        %p1073 = pneg %p216
      $region62: #{deep_classifier_forward.1} parent=59 // pred_check_branch
        %1075 = sbr.rel (%p1073) target = $region64
      $region63: #{deep_classifier_forward.1} parent=59 // pred_region
        %p1076 = scmp.lt.s32.totalorder %s20, 1
        %s1077 = scalar_select %p1076, %s20, 1
        %s1078 = smul.addr %s1077, 2
        %s1079 = smul.addr %s1078, 8
        %s1080 = scalar_lea.vmem %s8, %s1079
      $region64: #{deep_classifier_forward.1} parent=59 // pred_fallthru
        _
    $region60: #{deep_classifier_forward.1} parent=5 // pred_fallthru
      _
  $region6: #{deep_classifier_forward.1} parent=0 // loop_footer
    %s18 = sadd.s32 1, %s14
  $region7: #{deep_classifier_forward.1} parent=0 // loop_footer_branch
    %13 = sbr.rel target = $region3
  $region8: #{deep_classifier_forward.1} parent=0 // loop_exit
    _

</llo_original>
